<compile_context>
chip_gen: v6e
topology: v6e:2x2x1
jax: 0.10.0
libtpu: 0.0.40
codegen_flags: <defaults>
</compile_context>

<pallas_src>
import functools

import jax
import jax.numpy as jnp
from jax.experimental import pallas as pl
from jax.experimental.pallas import tpu as pltpu


def _seq_masked_ce_kernel(preds_ref, labels_ref, mask_ref, out_ref,
                          m_ref, s_ref, p_ref,
                          *, n_rows, row_tile, cls_num, cls_chunk,
                          needs_cls_mask, out_lanes):
    i = pl.program_id(0)          # row-tile index ("parallel")
    c = pl.program_id(1)          # class-chunk index ("arbitrary", reduction)
    last_c = pl.num_programs(1) - 1

    @pl.when(c == 0)
    def _():
        m_ref[...] = jnp.full_like(m_ref, -jnp.inf)
        s_ref[...] = jnp.zeros_like(s_ref)
        p_ref[...] = jnp.zeros_like(p_ref)

    x = preds_ref[...]                                   # (TM, CK) native dtype
    labels = labels_ref[...]                             # (TM, 1) int32

    cls_ids = (jax.lax.broadcasted_iota(jnp.int32, (row_tile, cls_chunk), 1)
               + c * cls_chunk)

    if needs_cls_mask:
        valid_cls = cls_ids < cls_num
        x_for_max = jnp.where(valid_cls, x, jnp.asarray(-jnp.inf, dtype=x.dtype))
    else:
        x_for_max = x

    # Row max on the native dtype (exact); only the (TM,1) column goes to f32.
    chunk_max = jnp.max(x_for_max, axis=-1, keepdims=True).astype(jnp.float32)
    m_old = m_ref[...]
    m_new = jnp.maximum(m_old, chunk_max)

    # f32 upcast is consumed exactly once inside the fused sub+exp+reduce.
    shifted = x.astype(jnp.float32) - m_new
    if needs_cls_mask:
        shifted = jnp.where(valid_cls, shifted, -jnp.inf)
    e_sum = jnp.sum(jnp.exp(shifted), axis=-1, keepdims=True)   # (TM, 1)

    s_ref[...] = s_ref[...] * jnp.exp(m_old - m_new) + e_sum
    m_ref[...] = m_new

    # Label-class logit: one-hot select + sum on native dtype (exact).
    picked = jnp.sum(jnp.where(cls_ids == labels, x,
                               jnp.asarray(0, dtype=x.dtype)),
                     axis=-1, keepdims=True).astype(jnp.float32)
    p_ref[...] = p_ref[...] + picked

    @pl.when(c == last_c)
    def _():
        mask = mask_ref[...].astype(jnp.float32)                 # (TM, 1)
        row_ids = (jax.lax.broadcasted_iota(jnp.int32, (row_tile, 1), 0)
                   + i * row_tile)
        valid_row = row_ids < n_rows                             # (TM, 1) bool

        nll = m_ref[...] + jnp.log(s_ref[...]) - p_ref[...]      # (TM, 1)

        # select (not multiply) keeps NaN/Inf in padded rows out of the sums.
        masked_loss = jnp.where(valid_row, nll * mask, 0.0)
        counted = jnp.where(valid_row & (mask != 0.0), 1.0, 0.0)

        total_sum = jnp.sum(masked_loss, keepdims=True)          # (1, 1)
        total_cnt = jnp.sum(counted, keepdims=True)              # (1, 1)

        lane = jax.lax.broadcasted_iota(jnp.int32, (1, out_lanes), 1)
        out_ref[...] = jnp.where(lane == 0, total_sum,
                                 jnp.where(lane == 1, total_cnt, 0.0))


def seq_masked_cross_entropy_loss(preds, labels, seq_mask, loss_weight=1.0,
                                  row_tile=None, class_chunk=512,
                                  vmem_budget_bytes=16 * 1024 * 1024,
                                  max_row_tile=512):
    """preds: [bs, seq, cls_num] float; labels: [bs, seq] int; seq_mask: [bs, seq]."""
    bs, seq, cls_num = preds.shape
    n = bs * seq

    preds2d = preds.reshape(n, cls_num)                  # keep caller dtype
    labels2d = labels.reshape(n, 1).astype(jnp.int32)
    mask2d = seq_mask.reshape(n, 1).astype(jnp.float32)

    itemsize = jnp.dtype(preds.dtype).itemsize

    # Class-axis chunking: whole row if it fits, else 128-aligned chunks.
    if cls_num <= class_chunk:
        ck = cls_num
    else:
        ck = max(128, (int(class_chunk) // 128) * 128)
    num_chunks = pl.cdiv(cls_num, ck)
    needs_cls_mask = (cls_num % ck) != 0

    # Row-tile sizing against the REAL per-element VMEM cost:
    #   2*itemsize (double-buffered input) + ~12 B (f32 exp temp + int32 iota).
    if row_tile is None:
        bytes_per_row = ck * (2 * itemsize + 12) + 64
        tm = int(vmem_budget_bytes // bytes_per_row)
        tm = min(tm, int(max_row_tile))
    else:
        tm = int(row_tile)
    if n >= 8:
        tm = max(8, min((tm // 8) * 8, (n // 8) * 8))
    else:
        tm = n

    num_tiles = pl.cdiv(n, tm)
    out_lanes = 128

    cost = pl.CostEstimate(
        flops=5 * n * cls_num,
        transcendentals=n * cls_num,
        bytes_accessed=(n * cls_num * itemsize + n * 8
                        + num_tiles * out_lanes * 4),
    )

    partials = pl.pallas_call(
        functools.partial(_seq_masked_ce_kernel,
                          n_rows=n, row_tile=tm, cls_num=cls_num,
                          cls_chunk=ck, needs_cls_mask=needs_cls_mask,
                          out_lanes=out_lanes),
        out_shape=jax.ShapeDtypeStruct((num_tiles, out_lanes), jnp.float32),
        grid_spec=pltpu.PrefetchScalarGridSpec(
            num_scalar_prefetch=0,
            grid=(num_tiles, num_chunks),
            in_specs=[
                pl.BlockSpec((tm, ck), lambda i, c: (i, c)),
                pl.BlockSpec((tm, 1), lambda i, c: (i, 0)),
                pl.BlockSpec((tm, 1), lambda i, c: (i, 0)),
            ],
            out_specs=pl.BlockSpec((1, out_lanes), lambda i, c: (i, 0)),
            scratch_shapes=[
                pltpu.VMEM((tm, 1), jnp.float32),   # running max m
                pltpu.VMEM((tm, 1), jnp.float32),   # running exp-sum s
                pltpu.VMEM((tm, 1), jnp.float32),   # picked label logit
            ],
        ),
        compiler_params=pltpu.CompilerParams(
            dimension_semantics=("parallel", "arbitrary"),
            vmem_limit_bytes=32 * 1024 * 1024),
        cost_estimate=cost,
    )(preds2d, labels2d, mask2d)

    total = jnp.sum(partials[:, 0])
    count = jnp.sum(partials[:, 1])
    # NOTE: all-zero seq_mask yields NaN/Inf, matching the reference module's
    # division by len(nonzero(seq_mask)) == 0.
    return loss_weight * total / count


def _reference(preds, labels, seq_mask, loss_weight=1.0):
    # Pure-JAX reference mirroring F.cross_entropy(reduction='none') semantics.
    bs, seq, cls_num = preds.shape
    logits = preds.reshape(-1, cls_num).astype(jnp.float32)
    lbl = labels.reshape(-1)
    logp = jax.nn.log_softmax(logits, axis=-1)
    nll = -jnp.take_along_axis(logp, lbl[:, None], axis=-1)[:, 0]
    loss = nll.reshape(bs, seq) * seq_mask.astype(jnp.float32)
    non_mask_num = jnp.sum(seq_mask != 0)
    return loss_weight * jnp.sum(loss) / non_mask_num


if __name__ == "__main__":
    key = jax.random.PRNGKey(0)

    # Case 1: small f32 problem, single tile, single class chunk (C=32 also
    # exercises the non-multiple-of-128 full-dim lane handling).
    bs, seq, cls_num = 2, 8, 32
    k1, k2, k3 = jax.random.split(key, 3)
    preds = jax.random.normal(k1, (bs, seq, cls_num), dtype=jnp.float32)
    labels = jax.random.randint(k2, (bs, seq), 0, cls_num, dtype=jnp.int32)
    seq_mask = (jax.random.uniform(k3, (bs, seq)) > 0.3).astype(jnp.float32)
    seq_mask = seq_mask.at[0, 0].set(1.0)   # guarantee at least one nonzero

    loss = seq_masked_cross_entropy_loss(preds, labels, seq_mask,
                                         loss_weight=1.0)
    loss = jax.block_until_ready(loss)
    ref = _reference(preds, labels, seq_mask, loss_weight=1.0)
    assert jnp.allclose(loss, ref, rtol=1e-5, atol=1e-5), (loss, ref)

    # Case 2: bf16 preds, N not divisible by the row tile (multi-tile grid and
    # padded-tail row masking path).
    bs2, seq2, cls2 = 2, 13, 128
    k4, k5, k6 = jax.random.split(k3, 3)
    preds_b = jax.random.normal(k4, (bs2, seq2, cls2), dtype=jnp.bfloat16)
    labels_b = jax.random.randint(k5, (bs2, seq2), 0, cls2, dtype=jnp.int32)
    mask_b = (jax.random.uniform(k6, (bs2, seq2)) > 0.4).astype(jnp.float32)
    mask_b = mask_b.at[0, 0].set(1.0)

    loss_b = seq_masked_cross_entropy_loss(preds_b, labels_b, mask_b,
                                           loss_weight=2.0, row_tile=8)
    loss_b = jax.block_until_ready(loss_b)
    ref_b = _reference(preds_b, labels_b, mask_b, loss_weight=2.0)
    assert jnp.allclose(loss_b, ref_b, rtol=1e-4, atol=1e-4), (loss_b, ref_b)

    # Case 3: class-axis chunking (C=640 > 512 chunk, non-multiple of the
    # chunk -> online log-sum-exp with padded-class-lane masking), plus a
    # padded-tail row tile (N=18).
    bs3, seq3, cls3 = 2, 9, 640
    k7, k8, k9 = jax.random.split(k6, 3)
    preds_c = jax.random.normal(k7, (bs3, seq3, cls3), dtype=jnp.float32)
    labels_c = jax.random.randint(k8, (bs3, seq3), 0, cls3, dtype=jnp.int32)
    mask_c = (jax.random.uniform(k9, (bs3, seq3)) > 0.5).astype(jnp.float32)
    mask_c = mask_c.at[0, 0].set(1.0)

    loss_c = seq_masked_cross_entropy_loss(preds_c, labels_c, mask_c,
                                           loss_weight=0.5)
    loss_c = jax.block_until_ready(loss_c)
    ref_c = _reference(preds_c, labels_c, mask_c, loss_weight=0.5)
    assert jnp.allclose(loss_c, ref_c, rtol=1e-4, atol=1e-5), (loss_c, ref_c)

    print("KERNEL_OK")
</pallas_src>

<mosaic_0001>
module attributes {stable_mosaic.version = 11 : i64} {
  func.func @_seq_masked_ce_kernel(%arg0: i32, %arg1: i32, %arg2: memref<16x32xf32, #tpu.memory_space<vmem>>, %arg3: memref<16x1xi32, #tpu.memory_space<vmem>>, %arg4: memref<16x1xf32, #tpu.memory_space<vmem>>, %arg5: memref<1x128xf32, #tpu.memory_space<vmem>>, %arg6: memref<16x1xf32, #tpu.memory_space<vmem>>, %arg7: memref<16x1xf32, #tpu.memory_space<vmem>>, %arg8: memref<16x1xf32, #tpu.memory_space<vmem>>) attributes {dimension_semantics = [#tpu.dimension_semantics<parallel>, #tpu.dimension_semantics<arbitrary>], iteration_bounds = array<i64: 1, 1>, scalar_prefetch = 0 : i64, scratch_operands = 3 : i64, tpu.core_type = #tpu.core_type<tc>, window_params = [{transform_indices = @transform_0, window_bounds = array<i64: 16, 32>}, {transform_indices = @transform_1, window_bounds = array<i64: 16, 1>}, {transform_indices = @transform_2, window_bounds = array<i64: 16, 1>}, {transform_indices = @transform_3, window_bounds = array<i64: 1, 128>}]} {
    %c0_i32 = arith.constant 0 : i32
    %0 = arith.cmpi eq, %arg1, %c0_i32 : i32
    %1 = arith.extui %0 : i1 to i32
    %c0_i32_0 = arith.constant 0 : i32
    %2 = arith.cmpi ne, %1, %c0_i32_0 : i32
    scf.if %2 {
      %cst_21 = arith.constant 0xFF800000 : f32
      %37 = vector.broadcast %cst_21 : f32 to vector<16x1xf32>
      %c0_22 = arith.constant 0 : index
      %c0_23 = arith.constant 0 : index
      %38 = vector.load %arg6[%c0_22, %c0_23] : memref<16x1xf32, #tpu.memory_space<vmem>>, vector<16x1xf32>
      tpu.vector_store %arg6[%c0_22, %c0_23], %37 {strides = array<i32>} : memref<16x1xf32, #tpu.memory_space<vmem>>, vector<16x1xf32>,
      %cst_24 = arith.constant 0.000000e+00 : f32
      %39 = vector.broadcast %cst_24 : f32 to vector<16x1xf32>
      %c0_25 = arith.constant 0 : index
      %c0_26 = arith.constant 0 : index
      %40 = vector.load %arg7[%c0_25, %c0_26] : memref<16x1xf32, #tpu.memory_space<vmem>>, vector<16x1xf32>
      tpu.vector_store %arg7[%c0_25, %c0_26], %39 {strides = array<i32>} : memref<16x1xf32, #tpu.memory_space<vmem>>, vector<16x1xf32>,
      %cst_27 = arith.constant 0.000000e+00 : f32
      %41 = vector.broadcast %cst_27 : f32 to vector<16x1xf32>
      %c0_28 = arith.constant 0 : index
      %c0_29 = arith.constant 0 : index
      %42 = vector.load %arg8[%c0_28, %c0_29] : memref<16x1xf32, #tpu.memory_space<vmem>>, vector<16x1xf32>
      tpu.vector_store %arg8[%c0_28, %c0_29], %41 {strides = array<i32>} : memref<16x1xf32, #tpu.memory_space<vmem>>, vector<16x1xf32>,
    } else {
    }
    %c0 = arith.constant 0 : index
    %c0_1 = arith.constant 0 : index
    %3 = vector.load %arg2[%c0, %c0_1] : memref<16x32xf32, #tpu.memory_space<vmem>>, vector<16x32xf32>
    %c0_2 = arith.constant 0 : index
    %c0_3 = arith.constant 0 : index
    %4 = vector.load %arg3[%c0_2, %c0_3] : memref<16x1xi32, #tpu.memory_space<vmem>>, vector<16x1xi32>
    %5 = tpu.iota {dimensions = array<i32: 1>} : vector<16x32xi32>
    %c32_i32 = arith.constant 32 : i32
    %6 = arith.muli %arg1, %c32_i32 : i32
    %7 = vector.broadcast %6 : i32 to vector<16x32xi32>
    %8 = arith.addi %5, %7 : vector<16x32xi32>
    %cst = arith.constant dense<0xFF800000> : vector<16xf32>
    %9 = vector.multi_reduction <maximumf>, %3, %cst [1] : vector<16x32xf32> to vector<16xf32>
    %10 = vector.shape_cast %9 : vector<16xf32> to vector<16x1xf32>
    %c0_4 = arith.constant 0 : index
    %c0_5 = arith.constant 0 : index
    %11 = vector.load %arg6[%c0_4, %c0_5] : memref<16x1xf32, #tpu.memory_space<vmem>>, vector<16x1xf32>
    %12 = arith.maximumf %11, %10 : vector<16x1xf32>
    %13 = vector.broadcast %12 : vector<16x1xf32> to vector<16x32xf32>
    %14 = arith.subf %3, %13 : vector<16x32xf32>
    %15 = math.exp %14 : vector<16x32xf32>
    %cst_6 = arith.constant dense<0.000000e+00> : vector<16xf32>
    %16 = vector.multi_reduction <add>, %15, %cst_6 [1] : vector<16x32xf32> to vector<16xf32>
    %17 = vector.shape_cast %16 : vector<16xf32> to vector<16x1xf32>
    %c0_7 = arith.constant 0 : index
    %c0_8 = arith.constant 0 : index
    %18 = vector.load %arg7[%c0_7, %c0_8] : memref<16x1xf32, #tpu.memory_space<vmem>>, vector<16x1xf32>
    %19 = arith.subf %11, %12 : vector<16x1xf32>
    %20 = math.exp %19 : vector<16x1xf32>
    %21 = arith.mulf %18, %20 : vector<16x1xf32>
    %22 = arith.addf %21, %17 : vector<16x1xf32>
    %c0_9 = arith.constant 0 : index
    %c0_10 = arith.constant 0 : index
    %23 = vector.load %arg7[%c0_9, %c0_10] : memref<16x1xf32, #tpu.memory_space<vmem>>, vector<16x1xf32>
    tpu.vector_store %arg7[%c0_9, %c0_10], %22 {strides = array<i32>} : memref<16x1xf32, #tpu.memory_space<vmem>>, vector<16x1xf32>,
    %c0_11 = arith.constant 0 : index
    %c0_12 = arith.constant 0 : index
    %24 = vector.load %arg6[%c0_11, %c0_12] : memref<16x1xf32, #tpu.memory_space<vmem>>, vector<16x1xf32>
    tpu.vector_store %arg6[%c0_11, %c0_12], %12 {strides = array<i32>} : memref<16x1xf32, #tpu.memory_space<vmem>>, vector<16x1xf32>,
    %25 = vector.broadcast %4 : vector<16x1xi32> to vector<16x32xi32>
    %26 = arith.cmpi eq, %8, %25 : vector<16x32xi32>
    %cst_13 = arith.constant 0.000000e+00 : f32
    %27 = vector.broadcast %cst_13 : f32 to vector<16x32xf32>
    %28 = arith.select %26, %3, %27 : vector<16x32xi1>, vector<16x32xf32>
    %cst_14 = arith.constant dense<0.000000e+00> : vector<16xf32>
    %29 = vector.multi_reduction <add>, %28, %cst_14 [1] : vector<16x32xf32> to vector<16xf32>
    %30 = vector.shape_cast %29 : vector<16xf32> to vector<16x1xf32>
    %c0_15 = arith.constant 0 : index
    %c0_16 = arith.constant 0 : index
    %31 = vector.load %arg8[%c0_15, %c0_16] : memref<16x1xf32, #tpu.memory_space<vmem>>, vector<16x1xf32>
    %32 = arith.addf %31, %30 : vector<16x1xf32>
    %c0_17 = arith.constant 0 : index
    %c0_18 = arith.constant 0 : index
    %33 = vector.load %arg8[%c0_17, %c0_18] : memref<16x1xf32, #tpu.memory_space<vmem>>, vector<16x1xf32>
    tpu.vector_store %arg8[%c0_17, %c0_18], %32 {strides = array<i32>} : memref<16x1xf32, #tpu.memory_space<vmem>>, vector<16x1xf32>,
    %c0_i32_19 = arith.constant 0 : i32
    %34 = arith.cmpi eq, %arg1, %c0_i32_19 : i32
    %35 = arith.extui %34 : i1 to i32
    %c0_i32_20 = arith.constant 0 : i32
    %36 = arith.cmpi ne, %35, %c0_i32_20 : i32
    scf.if %36 {
      %c0_21 = arith.constant 0 : index
      %c0_22 = arith.constant 0 : index
      %37 = vector.load %arg4[%c0_21, %c0_22] : memref<16x1xf32, #tpu.memory_space<vmem>>, vector<16x1xf32>
      %38 = tpu.iota {dimensions = array<i32: 0>} : vector<16x1xi32>
      %c16_i32 = arith.constant 16 : i32
      %39 = arith.muli %arg0, %c16_i32 : i32
      %40 = vector.broadcast %39 : i32 to vector<16x1xi32>
      %41 = arith.addi %38, %40 : vector<16x1xi32>
      %c16_i32_23 = arith.constant 16 : i32
      %42 = vector.broadcast %c16_i32_23 : i32 to vector<16x1xi32>
      %43 = arith.cmpi slt, %41, %42 : vector<16x1xi32>
      %c0_24 = arith.constant 0 : index
      %c0_25 = arith.constant 0 : index
      %44 = vector.load %arg6[%c0_24, %c0_25] : memref<16x1xf32, #tpu.memory_space<vmem>>, vector<16x1xf32>
      %c0_26 = arith.constant 0 : index
      %c0_27 = arith.constant 0 : index
      %45 = vector.load %arg7[%c0_26, %c0_27] : memref<16x1xf32, #tpu.memory_space<vmem>>, vector<16x1xf32>
      %46 = math.log %45 : vector<16x1xf32>
      %47 = arith.addf %44, %46 : vector<16x1xf32>
      %c0_28 = arith.constant 0 : index
      %c0_29 = arith.constant 0 : index
      %48 = vector.load %arg8[%c0_28, %c0_29] : memref<16x1xf32, #tpu.memory_space<vmem>>, vector<16x1xf32>
      %49 = arith.subf %47, %48 : vector<16x1xf32>
      %50 = arith.mulf %49, %37 : vector<16x1xf32>
      %cst_30 = arith.constant 0.000000e+00 : f32
      %51 = vector.broadcast %cst_30 : f32 to vector<16x1xf32>
      %52 = arith.select %43, %50, %51 : vector<16x1xi1>, vector<16x1xf32>
      %cst_31 = arith.constant 0.000000e+00 : f32
      %53 = vector.broadcast %cst_31 : f32 to vector<16x1xf32>
      %54 = arith.cmpf one, %37, %53 : vector<16x1xf32>
      %55 = arith.andi %43, %54 : vector<16x1xi1>
      %cst_32 = arith.constant 1.000000e+00 : f32
      %cst_33 = arith.constant 0.000000e+00 : f32
      %56 = vector.broadcast %cst_32 : f32 to vector<16x1xf32>
      %57 = vector.broadcast %cst_33 : f32 to vector<16x1xf32>
      %58 = arith.select %55, %56, %57 : vector<16x1xi1>, vector<16x1xf32>
      %59 = vector.shape_cast %52 : vector<16x1xf32> to vector<1x16x1xf32>
      %cst_34 = arith.constant dense<0.000000e+00> : vector<1xf32>
      %60 = vector.multi_reduction <add>, %59, %cst_34 [1, 2] : vector<1x16x1xf32> to vector<1xf32>
      %61 = vector.shape_cast %60 : vector<1xf32> to vector<1x1x1xf32>
      %62 = vector.extract %61[0, 0, 0] : f32 from vector<1x1x1xf32>
      %63 = vector.broadcast %62 : f32 to vector<1x1xf32>
      %64 = vector.shape_cast %58 : vector<16x1xf32> to vector<1x16x1xf32>
      %cst_35 = arith.constant dense<0.000000e+00> : vector<1xf32>
      %65 = vector.multi_reduction <add>, %64, %cst_35 [1, 2] : vector<1x16x1xf32> to vector<1xf32>
      %66 = vector.shape_cast %65 : vector<1xf32> to vector<1x1x1xf32>
      %67 = vector.extract %66[0, 0, 0] : f32 from vector<1x1x1xf32>
      %68 = vector.broadcast %67 : f32 to vector<1x1xf32>
      %69 = tpu.iota {dimensions = array<i32: 1>} : vector<1x128xi32>
      %c0_i32_36 = arith.constant 0 : i32
      %70 = vector.broadcast %c0_i32_36 : i32 to vector<1x128xi32>
      %71 = arith.cmpi eq, %69, %70 : vector<1x128xi32>
      %c1_i32 = arith.constant 1 : i32
      %72 = vector.broadcast %c1_i32 : i32 to vector<1x128xi32>
      %73 = arith.cmpi eq, %69, %72 : vector<1x128xi32>
      %cst_37 = arith.constant 0.000000e+00 : f32
      %74 = vector.shape_cast %68 : vector<1x1xf32> to vector<1x1xf32>
      %75 = vector.broadcast %74 : vector<1x1xf32> to vector<1x128xf32>
      %76 = vector.broadcast %cst_37 : f32 to vector<1x128xf32>
      %77 = arith.select %73, %75, %76 : vector<1x128xi1>, vector<1x128xf32>
      %78 = vector.shape_cast %63 : vector<1x1xf32> to vector<1x1xf32>
      %79 = vector.broadcast %78 : vector<1x1xf32> to vector<1x128xf32>
      %80 = arith.select %71, %79, %77 : vector<1x128xi1>, vector<1x128xf32>
      %c0_38 = arith.constant 0 : index
      %c0_39 = arith.constant 0 : index
      %81 = vector.load %arg5[%c0_38, %c0_39] : memref<1x128xf32, #tpu.memory_space<vmem>>, vector<1x128xf32>
      tpu.vector_store %arg5[%c0_38, %c0_39], %80 {strides = array<i32>} : memref<1x128xf32, #tpu.memory_space<vmem>>, vector<1x128xf32>,
    } else {
    }
    return
  }
  func.func @transform_0(%arg0: i32, %arg1: i32) -> (i32, i32) {
    %c0_i32 = arith.constant 0 : i32
    return %arg0, %arg1 : i32, i32
  }
  func.func @transform_1(%arg0: i32, %arg1: i32) -> (i32, i32) {
    %c0_i32 = arith.constant 0 : i32
    %c0_i32_0 = arith.constant 0 : i32
    return %arg0, %c0_i32 : i32, i32
  }
  func.func @transform_2(%arg0: i32, %arg1: i32) -> (i32, i32) {
    %c0_i32 = arith.constant 0 : i32
    %c0_i32_0 = arith.constant 0 : i32
    return %arg0, %c0_i32 : i32, i32
  }
  func.func @transform_3(%arg0: i32, %arg1: i32) -> (i32, i32) {
    %c0_i32 = arith.constant 0 : i32
    %c0_i32_0 = arith.constant 0 : i32
    return %arg0, %c0_i32 : i32, i32
  }
}

</mosaic_0001>

<llo_original>
// kernel: tpu_custom_call.1
$region0: #{tpu_custom_call.1}
  #allocation0 [shape = 'u32[]', space=smem, size = 0x4, offset = 0x4, fixed_abs, tag = 'smem constant byte address 0x4 - core index']
  #allocation1 [shape = 'u32[144,128]{1,0:T(1,128)}', space=vmem, size = 0x12000, scoped, tag = 'internal scratch']
  #allocation2 [shape = 'f32[16,1]{1,0:T(8,128)}', space=vmem, size = 0x2000, scoped, tag = 'scratch operand']
  #allocation3 [shape = 'f32[16,1]{1,0:T(8,128)}', space=vmem, size = 0x2000, scoped, tag = 'scratch operand']
  #allocation4 [shape = 'f32[16,1]{1,0:T(8,128)}', space=vmem, size = 0x2000, scoped, tag = 'scratch operand']
  %s0 = inlined_call_operand.vmem [shape: f32[16,32], index: 0, kind: input, shape index: {}]
  %s1 = inlined_call_operand.vmem [shape: s32[16,1], index: 1, kind: input, shape index: {}]
  %s2 = inlined_call_operand.vmem [shape: f32[16,1], index: 2, kind: input, shape index: {}]
  %s3 = inlined_call_operand.hbm [shape: f32[1,128], index: 3, kind: output, shape index: {}]
  %s4 = sld [smem:[#allocation0]]
  $region30: #{tpu_custom_call.1} parent=0
    _
  %s6 = ssub.s32 1, %s4
  %s7 = scalar_select 0, %s6, %s4
  $region1: #{tpu_custom_call.1} parent=0
    #allocation5 [shape = 'u8[512]{0}', space=vmem, size = 0x400, scoped, tag = 'output window, operand 0, single buffered']
    #allocation6 [shape = 's32[1]{0}', space=sflag, size = 0x4, scoped, tag = 'scoped memory for tpu_custom_call.1']
    %8 = vsyncpa [#allocation6], 0
    // Predicated region
    $region2: #{tpu_custom_call.1} parent=1 // pred_check
      _
    $region3: #{tpu_custom_call.1} parent=1 // pred_check_branch
      %10 = sbr.rel (0) target = $region5
    $region4: #{tpu_custom_call.1} parent=1 // pred_region
      _
    $region5: #{tpu_custom_call.1} parent=1 // pred_fallthru
      _
    // Predicated region
    $region6: #{tpu_custom_call.1} parent=1 // pred_check
      _
    $region7: #{tpu_custom_call.1} parent=1 // pred_check_branch
      %12 = sbr.rel (0) target = $region9
    $region8: #{tpu_custom_call.1} parent=1 // pred_region
      _
    $region9: #{tpu_custom_call.1} parent=1 // pred_fallthru
      _
    // Predicated region
    $region10: #{tpu_custom_call.1} parent=1 // pred_check
      _
    $region11: #{tpu_custom_call.1} parent=1 // pred_check_branch
      %14 = sbr.rel (0) target = $region13
    $region12: #{tpu_custom_call.1} parent=1 // pred_region
      _
    $region13: #{tpu_custom_call.1} parent=1 // pred_fallthru
      _
    %p15 = scmp.eq.s32.totalorder 0, 0
    // Predicated region
    $region14: #{tpu_custom_call.1} parent=1 // pred_check
      %p16 = pneg %p15
    $region15: #{tpu_custom_call.1} parent=1 // pred_check_branch
      %18 = sbr.rel (%p16) target = $region17
    $region16: #{tpu_custom_call.1} parent=1 // pred_region
      %vm19 = vcmask 7168
      %20 = vst.msk [vmem:[#allocation2] sm:$0xff] %vm19, -inf
      %21 = vst.msk [vmem:[#allocation2 + $0x8] sm:$0xff] %vm19, -inf
      %22 = vst.msk [vmem:[#allocation3] sm:$0xff] %vm19, 0.0
      %23 = vst.msk [vmem:[#allocation3 + $0x8] sm:$0xff] %vm19, 0.0
      %24 = vst.msk [vmem:[#allocation4] sm:$0xff] %vm19, 0.0
      %25 = vst.msk [vmem:[#allocation4 + $0x8] sm:$0xff] %vm19, 0.0
    $region17: #{tpu_custom_call.1} parent=1 // pred_fallthru
      _
    %v26 = vld [vmem:[%s0] sm:$0xff]
    %v27 = vld [vmem:[%s0 + $0x8] sm:$0xff]
    %v28 = vld [vmem:[%s1] sm:$0xff]
    %v29 = vld [vmem:[%s1 + $0x8] sm:$0xff]
    %v30 = vlaneseq
    %v31 = vand.u32 %v30, 127
    %s32 = smul.u32 0, 32
    %v33 = vstv %s32
    %v34 = vadd.s32 %v31, %v33
    %vm35 = vcmask 261120
    %v36 = vsel %vm35, %v26, -inf
    %37 = vmax.xlane.f32.xlu0 %v36
    %v38 = vpop.xlane.xlu0 %37
    %v39 = vsel %vm35, %v27, -inf
    %40 = vmax.xlane.f32.xlu0 %v39
    %v41 = vpop.xlane.xlu0 %40
    %v42 = vld [vmem:[#allocation2] sm:$0xff]
    %v43 = vld [vmem:[#allocation2 + $0x8] sm:$0xff]
    %v44 = vmax.f32 %v42, %v38
    %v45 = vmax.f32 %v43, %v41
    %47 = vset.pattern.permute.xlu0 0
    %48 = vperm.xlu0 %47, %v44
    %v49 = vpop.permute.xlu0 %48
    %52 = vset.pattern.permute.xlu0 0
    %53 = vperm.xlu0 %52, %v45
    %v54 = vpop.permute.xlu0 %53
    %v56 = vsub.f32 %v26, %v49
    %v57 = vsub.f32 %v27, %v54
    %v58 = vmul.f32 %v56, 1.442695
    %v59 = vpow.pop %v58
    %v60 = vmul.f32 %v57, 1.442695
    %v61 = vpow.pop %v60
    %v62 = vsel %vm35, %v59, 0.0
    %63 = vadd.xlane.f32.xlu0 %v62
    %v64 = vpop.xlane.xlu0 %63
    %v65 = vsel %vm35, %v61, 0.0
    %66 = vadd.xlane.f32.xlu0 %v65
    %v67 = vpop.xlane.xlu0 %66
    %v68 = vld [vmem:[#allocation3] sm:$0xff]
    %v69 = vld [vmem:[#allocation3 + $0x8] sm:$0xff]
    %v70 = vsub.f32 %v42, %v44
    %v71 = vsub.f32 %v43, %v45
    %v72 = vmul.f32 %v70, 1.442695
    %v73 = vpow.pop %v72
    %v74 = vmul.f32 %v71, 1.442695
    %v75 = vpow.pop %v74
    %v76 = vmul.f32 %v68, %v73
    %v77 = vmul.f32 %v69, %v75
    %v78 = vadd.f32 %v76, %v64
    %v79 = vadd.f32 %v77, %v67
    %vm80 = vcmask 7168
    %81 = vst.msk [vmem:[#allocation3] sm:$0xff] %vm80, %v78
    %82 = vst.msk [vmem:[#allocation3 + $0x8] sm:$0xff] %vm80, %v79
    %83 = vst.msk [vmem:[#allocation2] sm:$0xff] %vm80, %v44
    %84 = vst.msk [vmem:[#allocation2 + $0x8] sm:$0xff] %vm80, %v45
    %85 = vset.pattern.permute.xlu0 0
    %86 = vperm.xlu0 %85, %v28
    %v87 = vpop.permute.xlu0 %86
    %88 = vset.pattern.permute.xlu0 0
    %89 = vperm.xlu0 %88, %v29
    %v90 = vpop.permute.xlu0 %89
    %vm91 = vcmp.eq.s32.totalorder %v34, %v87
    %vm92 = vcmp.eq.s32.totalorder %v34, %v90
    %v93 = vsel %vm91, %v26, 0.0
    %v94 = vsel %vm92, %v27, 0.0
    %v95 = vsel %vm35, %v93, 0.0
    %96 = vadd.xlane.f32.xlu0 %v95
    %v97 = vpop.xlane.xlu0 %96
    %v98 = vsel %vm35, %v94, 0.0
    %99 = vadd.xlane.f32.xlu0 %v98
    %v100 = vpop.xlane.xlu0 %99
    %v101 = vld [vmem:[#allocation4] sm:$0xff]
    %v102 = vld [vmem:[#allocation4 + $0x8] sm:$0xff]
    %v103 = vadd.f32 %v101, %v97
    %v104 = vadd.f32 %v102, %v100
    %105 = vst.msk [vmem:[#allocation4] sm:$0xff] %vm80, %v103
    %106 = vst.msk [vmem:[#allocation4 + $0x8] sm:$0xff] %vm80, %v104
    // Predicated region
    $region18: #{tpu_custom_call.1} parent=1 // pred_check
      %p107 = pneg %p15
    $region19: #{tpu_custom_call.1} parent=1 // pred_check_branch
      %109 = sbr.rel (%p107) target = $region21
    $region20: #{tpu_custom_call.1} parent=1 // pred_region
      %v110 = vld [vmem:[%s2] sm:$0xff]
      %v111 = vld [vmem:[%s2 + $0x8] sm:$0xff]
      %v112 = vlaneseq
      %v113 = vshrl.u32 %v112, 7
      %v114 = vadd.s32 %v113, 8
      %s115 = smul.u32 0, 16
      %v116 = vstv %s115
      %v117 = vadd.s32 %v113, %v116
      %v118 = vadd.s32 %v114, %v116
      %vm119 = vcmp.lt.s32.totalorder %v117, 16
      %vm120 = vcmp.lt.s32.totalorder %v118, 16
      %v121 = vld [vmem:[#allocation2] sm:$0xff]
      %v122 = vld [vmem:[#allocation2 + $0x8] sm:$0xff]
      %v123 = vld [vmem:[#allocation3] sm:$0xff]
      %v124 = vld [vmem:[#allocation3 + $0x8] sm:$0xff]
      %v125 = vlog2.pop %v123
      %v126 = vmul.f32 %v125, 0.6931472
      %v127 = vlog2.pop %v124
      %v128 = vmul.f32 %v127, 0.6931472
      %v129 = vadd.f32 %v121, %v126
      %v130 = vadd.f32 %v122, %v128
      %v131 = vld [vmem:[#allocation4] sm:$0xff]
      %v132 = vld [vmem:[#allocation4 + $0x8] sm:$0xff]
      %v133 = vsub.f32 %v129, %v131
      %v134 = vsub.f32 %v130, %v132
      %v135 = vmul.f32 %v133, %v110
      %v136 = vmul.f32 %v134, %v111
      %v137 = vsel %vm119, %v135, 0.0
      %v138 = vsel %vm120, %v136, 0.0
      %vm139 = vcmp.ne.f32.partialorder %v110, 0.0
      %vm140 = vcmp.ne.f32.partialorder %v111, 0.0
      %vm141 = vmand %vm119, %vm139
      %vm142 = vmand %vm120, %vm140
      %v143 = vsel %vm141, 1.0, 0.0
      %v144 = vsel %vm142, 1.0, 0.0
      %v145 = vsel %vm80, %v137, 0.0
      %v146 = vsel %vm80, %v138, 0.0
      %v147 = vadd.f32 %v145, %v146
      %148 = vadd.xlane.f32.xlu0 %v147
      %v149 = vpop.xlane.xlu0 %148
      %v150 = vrot.slane %v149, 4
      %v151 = vadd.f32 %v149, %v150
      %v152 = vrot.slane %v151, 2
      %v153 = vadd.f32 %v151, %v152
      %v154 = vrot.slane %v153, 1
      %v155 = vadd.f32 %v153, %v154
      %s156 = vtos %v155
      %v157 = vsel %vm80, %v143, 0.0
      %v158 = vsel %vm80, %v144, 0.0
      %v159 = vadd.f32 %v157, %v158
      %160 = vadd.xlane.f32.xlu0 %v159
      %v161 = vpop.xlane.xlu0 %160
      %v162 = vrot.slane %v161, 4
      %v163 = vadd.f32 %v161, %v162
      %v164 = vrot.slane %v163, 2
      %v165 = vadd.f32 %v163, %v164
      %v166 = vrot.slane %v165, 1
      %v167 = vadd.f32 %v165, %v166
      %s168 = vtos %v167
      %vm169 = vcmp.eq.s32.totalorder %v31, 0
      %vm170 = vcmp.eq.s32.totalorder %v31, 1
      %v171 = vstv %s168
      %v172 = vsel %vm170, %v171, 0.0
      %v173 = vstv %s156
      %v174 = vsel %vm169, %v173, %v172
      %175 = vst [vmem:[#allocation5] sm:$0x1] %v174
    $region21: #{tpu_custom_call.1} parent=1 // pred_fallthru
      _
    // Predicated region
    $region22: #{tpu_custom_call.1} parent=1 // pred_check
      _
    $region23: #{tpu_custom_call.1} parent=1 // pred_check_branch
      %177 = sbr.rel (0) target = $region25
    $region24: #{tpu_custom_call.1} parent=1 // pred_region
      %s179 = ssub.s32 16, 16
      %180 = vsyncadd [#allocation6], %s179
      %s182 = sshll.u32 [#allocation5], 4
      %s183 = int_to_ptr.vmem [resolvable:$true] %s182
      %185 = dma.vmem_to_hbm [thread:$0]  %s183, 16, %s3, [#allocation6]
    $region25: #{tpu_custom_call.1} parent=1 // pred_fallthru
      _
    // Predicated region
    $region26: #{tpu_custom_call.1} parent=1 // pred_check
      _
    $region27: #{tpu_custom_call.1} parent=1 // pred_check_branch
      %187 = sbr.rel (0) target = $region29
    $region28: #{tpu_custom_call.1} parent=1 // pred_region
      %188 = dma.done [#allocation6], 16
    $region29: #{tpu_custom_call.1} parent=1 // pred_fallthru
      _
    %189 = vsyncpa [#allocation6], 1

</llo_original>
